<compile_context>
chip_gen: v7x
topology: tpu7x:2x2x1
jax: 0.10.0
libtpu: 0.0.40
codegen_flags: <defaults>
</compile_context>

<pallas_src>
import functools

import jax
import jax.numpy as jnp
from jax.experimental import pallas as pl
from jax.experimental.pallas import tpu as pltpu


def _sage_math(m, f, w, b, *, mxu_dtype):
    """Shared math (pure jnp) used both inside the kernel and by the matched reference.

    m: (G, N, N)   adjacency in mxu_dtype (0/1 values -> exact)
    f: (G, N, Din) features in mxu_dtype
    w: (Din, Dout) weight in mxu_dtype (Dout = lane-padded hidden width)
    b: (1, Dout)   bias, float32
    returns (G, N, Dout) float32
    """
    G, N, D_in = f.shape
    D_out = w.shape[1]

    # PyTorch: mask.sum(axis=-2)[..., None] + 1e-7  -> column sums, used to normalise row i.
    colsum = jnp.sum(m.astype(jnp.float32), axis=-2)                # (G, N)
    inv_denom = (1.0 / (colsum + 1e-7))[..., None]                  # (G, N, 1)

    if D_out < D_in:
        # Reassociate: mask @ (feat @ W) -- fewer MXU FLOPs when hidden width is the smaller dim.
        fw = jnp.dot(f.reshape(G * N, D_in), w,
                     preferred_element_type=jnp.float32).reshape(G, N, D_out)
        h = jnp.einsum("gij,gjk->gik", m, fw.astype(mxu_dtype),
                       preferred_element_type=jnp.float32) * inv_denom
    else:
        aggr = jnp.einsum("gij,gjd->gid", m, f,
                          preferred_element_type=jnp.float32)       # (G, N, Din)
        fn = (aggr * inv_denom).astype(mxu_dtype)                   # normalised features
        h = jnp.dot(fn.reshape(G * N, D_in), w,
                    preferred_element_type=jnp.float32).reshape(G, N, D_out)

    return jnp.maximum(h + b, 0.0)


def sage_kernel(mask_ref, feat_ref, w_ref, b_ref, out_ref, *, mxu_dtype):
    out = _sage_math(mask_ref[...], feat_ref[...], w_ref[...], b_ref[...],
                     mxu_dtype=mxu_dtype)
    out_ref[...] = out.astype(out_ref.dtype)


def _pad_params(weight, bias, mxu_dtype):
    """Cast W to the MXU dtype and zero-pad the hidden dim to a multiple of 128 lanes."""
    D_in, D_hid = weight.shape
    D_pad = max(128, pl.cdiv(D_hid, 128) * 128)
    w = weight.astype(mxu_dtype)
    b = bias.reshape(1, D_hid).astype(jnp.float32)
    if D_pad != D_hid:
        w = jnp.pad(w, ((0, 0), (0, D_pad - D_hid)))
        b = jnp.pad(b, ((0, 0), (0, D_pad - D_hid)))
    return w, b, D_pad


def _pick_graphs_per_step(B, N, D_in, D_pad, vmem_budget_bytes=4 * 1024 * 1024):
    """How many graphs to process per grid step (amortise per-step overhead, stay in VMEM)."""
    per_graph = 2 * (N * N + N * D_in) + 4 * N * D_pad   # bf16 inputs + f32 output, per graph
    g = max(1, min(B, vmem_budget_bytes // max(per_graph, 1)))
    g = max(1, min(g, max(1, 512 // max(N, 1))))         # cap at ~512 output rows per step
    return int(g)


def sage_forward(feat_in, mask, weight, bias, *, mxu_dtype=jnp.bfloat16,
                 graphs_per_step=None):
    B, N, D_in = feat_in.shape
    D_hid = weight.shape[1]

    w_pad, b_pad, D_pad = _pad_params(weight, bias, mxu_dtype)

    G = graphs_per_step or _pick_graphs_per_step(B, N, D_in, D_pad)
    num_steps = pl.cdiv(B, G)
    B_pad = num_steps * G

    # bf16 at the HBM boundary: mask (0/1) is exact; halves the dominant N^2 DMA stream.
    mask_c = mask.astype(mxu_dtype)
    feat_c = feat_in.astype(mxu_dtype)
    if B_pad != B:
        pad = ((0, B_pad - B), (0, 0), (0, 0))
        mask_c = jnp.pad(mask_c, pad)
        feat_c = jnp.pad(feat_c, pad)

    kernel = functools.partial(sage_kernel, mxu_dtype=mxu_dtype)

    out = pl.pallas_call(
        kernel,
        out_shape=jax.ShapeDtypeStruct((B_pad, N, D_pad), jnp.float32),
        grid=(num_steps,),
        in_specs=[
            pl.BlockSpec((G, N, N), lambda b: (b, 0, 0)),       # mask group
            pl.BlockSpec((G, N, D_in), lambda b: (b, 0, 0)),    # feat group
            pl.BlockSpec((D_in, D_pad), lambda b: (0, 0)),      # weight (replicated)
            pl.BlockSpec((1, D_pad), lambda b: (0, 0)),         # bias   (replicated)
        ],
        out_specs=pl.BlockSpec((G, N, D_pad), lambda b: (b, 0, 0)),
        compiler_params=pltpu.CompilerParams(
            dimension_semantics=("parallel",),
            vmem_limit_bytes=32 * 1024 * 1024),
    )(mask_c, feat_c, w_pad, b_pad)

    return out[:B, :, :D_hid]


def sage_matched_reference(feat_in, mask, weight, bias, mxu_dtype=jnp.bfloat16):
    """Plain-XLA reference with the SAME bf16-in / f32-accumulate math as the kernel."""
    D_hid = weight.shape[1]
    w_pad, b_pad, _ = _pad_params(weight, bias, mxu_dtype)
    out = _sage_math(mask.astype(mxu_dtype), feat_in.astype(mxu_dtype),
                     w_pad, b_pad, mxu_dtype=mxu_dtype)
    return out[..., :D_hid]


def sage_reference(feat_in, mask, weight, bias):
    """Pure-f32 reference with the module's exact semantics."""
    aggr = jnp.matmul(mask.astype(jnp.float32), feat_in)
    denom = jnp.sum(mask, axis=-2)[..., None] + 1e-7
    return jnp.maximum((aggr / denom) @ weight + bias, 0.0)


if __name__ == "__main__":
    B, N, D_in, D_hid = 2, 8, 32, 32

    key = jax.random.PRNGKey(0)
    k_feat, k_mask, k_w, k_b = jax.random.split(key, 4)

    feat_in = jax.random.normal(k_feat, (B, N, D_in), dtype=jnp.float32)
    # symmetric-ish 0/1 adjacency with self-loops
    mask = (jax.random.uniform(k_mask, (B, N, N)) > 0.5).astype(jnp.float32)
    mask = jnp.maximum(mask, jnp.eye(N, dtype=jnp.float32)[None])

    # deterministic parameter init (nn.Linear-style uniform bound)
    bound = 1.0 / (D_in ** 0.5)
    weight = jax.random.uniform(k_w, (D_in, D_hid), minval=-bound, maxval=bound,
                                dtype=jnp.float32)
    bias = jax.random.uniform(k_b, (D_hid,), minval=-bound, maxval=bound,
                              dtype=jnp.float32)

    out = sage_forward(feat_in, mask, weight, bias)
    jax.block_until_ready(out)
    assert out.shape == (B, N, D_hid)

    # Tight check: identical bf16-input / f32-accumulate math computed with plain XLA ops.
    matched = sage_matched_reference(feat_in, mask, weight, bias)
    assert jnp.allclose(out, matched, atol=2e-3, rtol=2e-3), "mismatch vs matched-precision reference"

    # Fidelity check vs the pure-f32 module semantics (bf16 MXU inputs => ~1e-3-level rel error).
    ref = sage_reference(feat_in, mask, weight, bias)
    assert jnp.allclose(out, ref, atol=5e-2, rtol=5e-2), "mismatch vs f32 module reference"

    print("KERNEL_OK")
</pallas_src>

<mosaic_0001>
module attributes {stable_mosaic.version = 11 : i64} {
  func.func @sage_kernel(%arg0: i32, %arg1: memref<2x8x8xbf16, #tpu.memory_space<vmem>>, %arg2: memref<2x8x32xbf16, #tpu.memory_space<vmem>>, %arg3: memref<32x128xbf16, #tpu.memory_space<vmem>>, %arg4: memref<1x128xf32, #tpu.memory_space<vmem>>, %arg5: memref<2x8x128xf32, #tpu.memory_space<vmem>>) attributes {dimension_semantics = [#tpu.dimension_semantics<parallel>], iteration_bounds = array<i64: 1>, scalar_prefetch = 0 : i64, scratch_operands = 0 : i64, tpu.core_type = #tpu.core_type<tc>, window_params = [{transform_indices = @transform_0, window_bounds = array<i64: 2, 8, 8>}, {transform_indices = @transform_1, window_bounds = array<i64: 2, 8, 32>}, {pipeline_mode = #tpu.pipeline_mode<synchronous>, transform_indices = @transform_2, window_bounds = array<i64: 32, 128>}, {pipeline_mode = #tpu.pipeline_mode<synchronous>, transform_indices = @transform_3, window_bounds = array<i64: 1, 128>}, {transform_indices = @transform_4, window_bounds = array<i64: 2, 8, 128>}]} {
    %c0 = arith.constant 0 : index
    %c0_0 = arith.constant 0 : index
    %c0_1 = arith.constant 0 : index
    %0 = vector.load %arg1[%c0, %c0_0, %c0_1] : memref<2x8x8xbf16, #tpu.memory_space<vmem>>, vector<2x8x8xbf16>
    %c0_2 = arith.constant 0 : index
    %c0_3 = arith.constant 0 : index
    %c0_4 = arith.constant 0 : index
    %1 = vector.load %arg2[%c0_2, %c0_3, %c0_4] : memref<2x8x32xbf16, #tpu.memory_space<vmem>>, vector<2x8x32xbf16>
    %c0_5 = arith.constant 0 : index
    %c0_6 = arith.constant 0 : index
    %2 = vector.load %arg3[%c0_5, %c0_6] : memref<32x128xbf16, #tpu.memory_space<vmem>>, vector<32x128xbf16>
    %c0_7 = arith.constant 0 : index
    %c0_8 = arith.constant 0 : index
    %3 = vector.load %arg4[%c0_7, %c0_8] : memref<1x128xf32, #tpu.memory_space<vmem>>, vector<1x128xf32>
    %4 = arith.extf %0 : vector<2x8x8xbf16> to vector<2x8x8xf32>
    %cst = arith.constant dense<0.000000e+00> : vector<2x8xf32>
    %5 = vector.multi_reduction <add>, %4, %cst [1] : vector<2x8x8xf32> to vector<2x8xf32>
    %cst_9 = arith.constant 1.000000e-07 : f32
    %6 = vector.broadcast %cst_9 : f32 to vector<2x8xf32>
    %7 = arith.addf %5, %6 : vector<2x8xf32>
    %cst_10 = arith.constant 1.000000e+00 : f32
    %8 = vector.broadcast %cst_10 : f32 to vector<2x8xf32>
    %9 = arith.divf %8, %7 : vector<2x8xf32>
    %10 = vector.shape_cast %9 : vector<2x8xf32> to vector<2x8x1xf32>
    "tpu.trace_start"() <{level = 10 : i32, message = "gij,gjd->gid"}> : () -> ()
    %cst_11 = arith.constant dense<0.000000e+00> : vector<2x8x32xf32>
    %11 = tpu.matmul %0, %1, %cst_11 {dimension_numbers = #tpu.dot_dimension_numbers<[2], [1], [1], [2], [0, 0, 0, 1, 1, 2], [0], [0]>} : vector<2x8x8xbf16>, vector<2x8x32xbf16>, vector<2x8x32xf32> -> vector<2x8x32xf32>
    "tpu.trace_stop"() : () -> ()
    %12 = vector.broadcast %10 : vector<2x8x1xf32> to vector<2x8x32xf32>
    %13 = arith.mulf %11, %12 : vector<2x8x32xf32>
    %14 = arith.truncf %13 : vector<2x8x32xf32> to vector<2x8x32xbf16>
    %15 = vector.shape_cast %14 : vector<2x8x32xbf16> to vector<16x32xbf16>
    %cst_12 = arith.constant dense<0.000000e+00> : vector<16x128xf32>
    %16 = tpu.matmul %15, %2, %cst_12 {dimension_numbers = #tpu.dot_dimension_numbers<[1], [0], [0], [1], [0, 0, 1, 1], [], []>} : vector<16x32xbf16>, vector<32x128xbf16>, vector<16x128xf32> -> vector<16x128xf32>
    %17 = vector.shape_cast %16 : vector<16x128xf32> to vector<2x8x128xf32>
    %18 = vector.shape_cast %3 : vector<1x128xf32> to vector<1x1x128xf32>
    %19 = vector.broadcast %18 : vector<1x1x128xf32> to vector<2x8x128xf32>
    %20 = arith.addf %17, %19 : vector<2x8x128xf32>
    %cst_13 = arith.constant 0.000000e+00 : f32
    %21 = vector.broadcast %cst_13 : f32 to vector<2x8x128xf32>
    %22 = arith.maximumf %20, %21 : vector<2x8x128xf32>
    %c0_14 = arith.constant 0 : index
    %c0_15 = arith.constant 0 : index
    %c0_16 = arith.constant 0 : index
    %23 = vector.load %arg5[%c0_14, %c0_15, %c0_16] : memref<2x8x128xf32, #tpu.memory_space<vmem>>, vector<2x8x128xf32>
    tpu.vector_store %arg5[%c0_14, %c0_15, %c0_16], %22 {strides = array<i32>} : memref<2x8x128xf32, #tpu.memory_space<vmem>>, vector<2x8x128xf32>,
    return
  }
  func.func @transform_0(%arg0: i32) -> (i32, i32, i32) {
    %c0_i32 = arith.constant 0 : i32
    %c0_i32_0 = arith.constant 0 : i32
    %c0_i32_1 = arith.constant 0 : i32
    return %arg0, %c0_i32, %c0_i32_0 : i32, i32, i32
  }
  func.func @transform_1(%arg0: i32) -> (i32, i32, i32) {
    %c0_i32 = arith.constant 0 : i32
    %c0_i32_0 = arith.constant 0 : i32
    %c0_i32_1 = arith.constant 0 : i32
    return %arg0, %c0_i32, %c0_i32_0 : i32, i32, i32
  }
  func.func @transform_2(%arg0: i32) -> (i32, i32) {
    %c0_i32 = arith.constant 0 : i32
    %c0_i32_0 = arith.constant 0 : i32
    %c0_i32_1 = arith.constant 0 : i32
    return %c0_i32, %c0_i32_0 : i32, i32
  }
  func.func @transform_3(%arg0: i32) -> (i32, i32) {
    %c0_i32 = arith.constant 0 : i32
    %c0_i32_0 = arith.constant 0 : i32
    %c0_i32_1 = arith.constant 0 : i32
    return %c0_i32, %c0_i32_0 : i32, i32
  }
  func.func @transform_4(%arg0: i32) -> (i32, i32, i32) {
    %c0_i32 = arith.constant 0 : i32
    %c0_i32_0 = arith.constant 0 : i32
    %c0_i32_1 = arith.constant 0 : i32
    return %arg0, %c0_i32, %c0_i32_0 : i32, i32, i32
  }
}

</mosaic_0001>

<llo_original>
// kernel: tpu_custom_call.1
$region0: #{tpu_custom_call.1}
  #allocation0 [shape = 'u32[]', space=smem, size = 0x4, offset = 0x4, fixed_abs, tag = 'smem constant byte address 0x4 - core index']
  #allocation1 [shape = 'u32[144,128]{1,0:T(1,128)}', space=vmem, size = 0x12000, scoped, tag = 'internal scratch']
  %s0 = inlined_call_operand.hbm [shape: bf16[2,8,8], index: 0, kind: input, shape index: {}]
  %s1 = inlined_call_operand.hbm [shape: bf16[2,8,32], index: 1, kind: input, shape index: {}]
  %s2 = inlined_call_operand.hbm [shape: bf16[32,128], index: 2, kind: input, shape index: {}]
  %s3 = inlined_call_operand.vmem [shape: f32[1,128], index: 3, kind: input, shape index: {}]
  %s4 = inlined_call_operand.hbm [shape: f32[2,8,128], index: 4, kind: output, shape index: {}]
  %s5 = sld [smem:[#allocation0]]
  $region38: #{tpu_custom_call.1} parent=0
    _
  %s7 = ssub.s32 1, %s5
  %s8 = scalar_select 0, %s7, %s5
  $region1: #{tpu_custom_call.1} parent=0
    #allocation2 [shape = 'u8[4096]{0}', space=vmem, size = 0x1000, scoped, tag = 'input window, operand 0, single buffered']
    #allocation3 [shape = 's32[1]{0}', space=sflag, size = 0x4, scoped, tag = 'scoped memory for tpu_custom_call.1']
    #allocation4 [shape = 's32[1]{0}', space=sflag, size = 0x4, scoped, tag = 'scoped memory for tpu_custom_call.1']
    #allocation5 [shape = 'u8[4096]{0}', space=vmem, size = 0x1000, scoped, tag = 'input window, operand 1, single buffered']
    #allocation6 [shape = 's32[1]{0}', space=sflag, size = 0x4, scoped, tag = 'scoped memory for tpu_custom_call.1']
    #allocation7 [shape = 'u8[8192]{0}', space=vmem, size = 0x2000, scoped, tag = 'input window, operand 2, single buffered']
    #allocation8 [shape = 'u8[8192]{0}', space=vmem, size = 0x2000, scoped, tag = 'output window, operand 0, single buffered']
    %9 = vsyncpa [#allocation3], 0
    %10 = vsyncpa [#allocation6], 0
    %11 = vsyncpa [#allocation4], 0
    // Predicated region
    $region2: #{tpu_custom_call.1} parent=1 // pred_check
      _
    $region3: #{tpu_custom_call.1} parent=1 // pred_check_branch
      %13 = sbr.rel (0) target = $region5
    $region4: #{tpu_custom_call.1} parent=1 // pred_region
      %s15 = ssub.s32 128, 128
      %16 = vsyncadd [#allocation3], %s15
      %s17 = sshll.u32 [#allocation2], 4
      %s18 = int_to_ptr.vmem [resolvable:$true] %s17
      %23 = dma.hbm_to_vmem [thread:$0]  %s0, 128, %s18, [#allocation3], 64, 64, 4
    $region5: #{tpu_custom_call.1} parent=1 // pred_fallthru
      _
    // Predicated region
    $region6: #{tpu_custom_call.1} parent=1 // pred_check
      _
    $region7: #{tpu_custom_call.1} parent=1 // pred_check_branch
      %25 = sbr.rel (0) target = $region9
    $region8: #{tpu_custom_call.1} parent=1 // pred_region
      %s27 = ssub.s32 128, 128
      %28 = vsyncadd [#allocation6], %s27
      %s29 = sshll.u32 [#allocation5], 4
      %s30 = int_to_ptr.vmem [resolvable:$true] %s29
      %35 = dma.hbm_to_vmem [thread:$0]  %s1, 128, %s30, [#allocation6], 64, 64, 4
    $region9: #{tpu_custom_call.1} parent=1 // pred_fallthru
      _
    // Predicated region
    $region10: #{tpu_custom_call.1} parent=1 // pred_check
      _
    $region11: #{tpu_custom_call.1} parent=1 // pred_check_branch
      %37 = sbr.rel (0) target = $region13
    $region12: #{tpu_custom_call.1} parent=1 // pred_region
      %s39 = ssub.s32 256, 256
      %40 = vsyncadd [#allocation6], %s39
      %s41 = sshll.u32 [#allocation7], 4
      %s42 = int_to_ptr.vmem [resolvable:$true] %s41
      %47 = dma.hbm_to_vmem [thread:$0]  %s2, 256, %s42, [#allocation6], 64, 64, 4
    $region13: #{tpu_custom_call.1} parent=1 // pred_fallthru
      _
    // Predicated region
    $region14: #{tpu_custom_call.1} parent=1 // pred_check
      _
    $region15: #{tpu_custom_call.1} parent=1 // pred_check_branch
      %49 = sbr.rel (0) target = $region17
    $region16: #{tpu_custom_call.1} parent=1 // pred_region
      _
    $region17: #{tpu_custom_call.1} parent=1 // pred_fallthru
      _
    // Predicated region
    $region18: #{tpu_custom_call.1} parent=1 // pred_check
      _
    $region19: #{tpu_custom_call.1} parent=1 // pred_check_branch
      %51 = sbr.rel (0) target = $region21
    $region20: #{tpu_custom_call.1} parent=1 // pred_region
      %52 = dma.done [#allocation3], 128
    $region21: #{tpu_custom_call.1} parent=1 // pred_fallthru
      _
    // Predicated region
    $region22: #{tpu_custom_call.1} parent=1 // pred_check
      _
    $region23: #{tpu_custom_call.1} parent=1 // pred_check_branch
      %54 = sbr.rel (0) target = $region25
    $region24: #{tpu_custom_call.1} parent=1 // pred_region
      %55 = dma.done [#allocation6], 128
    $region25: #{tpu_custom_call.1} parent=1 // pred_fallthru
      _
    // Predicated region
    $region26: #{tpu_custom_call.1} parent=1 // pred_check
      _
    $region27: #{tpu_custom_call.1} parent=1 // pred_check_branch
      %57 = sbr.rel (0) target = $region29
    $region28: #{tpu_custom_call.1} parent=1 // pred_region
      %58 = dma.done [#allocation6], 256
    $region29: #{tpu_custom_call.1} parent=1 // pred_fallthru
      _
    %v60 = vld [vmem:[#allocation2] sm:$0xf]
    %v61 = vld [vmem:[#allocation2 + $0x4] sm:$0xf]
    %v62 = vld [vmem:[#allocation5] sm:$0xf]
    %v63 = vld [vmem:[#allocation5 + $0x4] sm:$0xf]
    %v64 = vld [vmem:[#allocation7] sm:$0xf]
    %v65 = vld [vmem:[#allocation7 + $0x4] sm:$0xf]
    %v66 = vld [vmem:[#allocation7 + $0x8] sm:$0xf]
    %v67 = vld [vmem:[#allocation7 + $0xc] sm:$0xf]
    %v68 = vld [vmem:[%s3] sm:$0x1]
    %v69 = vunpack.c.l.bf16 %v60
    %v70 = vunpack.c.l.bf16 %v61
    %vm71 = vcmask 64512
    %v72 = vsel %vm71, %v69, 0.0
    %v73 = vrot.slane %v72, 4
    %v74 = vadd.f32 %v72, %v73
    %v75 = vrot.slane %v74, 2
    %v76 = vadd.f32 %v74, %v75
    %v77 = vrot.slane %v76, 1
    %v78 = vadd.f32 %v76, %v77
    %v79 = vsel %vm71, %v70, 0.0
    %v80 = vrot.slane %v79, 4
    %v81 = vadd.f32 %v79, %v80
    %v82 = vrot.slane %v81, 2
    %v83 = vadd.f32 %v81, %v82
    %v84 = vrot.slane %v83, 1
    %v85 = vadd.f32 %v83, %v84
    %v86 = vadd.f32 %v78, 1e-07
    %v87 = vadd.f32 %v85, 1e-07
    %v88 = vrcp.pop %v86
    %v89 = vmul.f32 1.0, %v88
    %v90 = vrcp.pop %v87
    %v91 = vmul.f32 1.0, %v90
    %93 = vbcast.lane.b32.xlu0 %v89, 256
    %v94 = vpop.permute.xlu0 %93
    %96 = vbcast.lane.b32.xlu0 %v91, 256
    %v97 = vpop.permute.xlu0 %96
    %v99 = vsel %vm71, %v60, 0
    %vm101 = vcmask 1043456
    %v103 = vsel %vm101, %v62, 0
    %105 = vmatprep.subr.bf16.mxu0 0
    %106 = vmatpush1.bf16.msra.mxu0 %v103
    %107 = vmatprep.subr.bf16.mxu0 0
    %108 = vmatpush1.bf16.msra.mxu0 0
    %109 = vmatprep.subr.bf16.mxu0 0
    %110 = vmatpush1.bf16.msra.mxu0 0
    %111 = vmatprep.subr.bf16.mxu0 0
    %112 = vmatpush1.bf16.msra.mxu0 0
    %113 = vmatprep.subr.bf16.mxu0 0
    %114 = vmatpush1.bf16.msra.mxu0 0
    %115 = vmatprep.subr.bf16.mxu0 0
    %116 = vmatpush1.bf16.msra.mxu0 0
    %117 = vmatprep.subr.bf16.mxu0 0
    %118 = vmatpush1.bf16.msra.mxu0 0
    %119 = vmatprep.subr.bf16.mxu0 0
    %120 = vmatpush1.bf16.msra.mxu0 0
    %121 = vmatprep.subr.bf16.mxu0 0
    %122 = vmatpush1.bf16.msra.mxu0 0
    %123 = vmatprep.subr.bf16.mxu0 0
    %124 = vmatpush1.bf16.msra.mxu0 0
    %125 = vmatprep.subr.bf16.mxu0 0
    %126 = vmatpush1.bf16.msra.mxu0 0
    %127 = vmatprep.subr.bf16.mxu0 0
    %128 = vmatpush1.bf16.msra.mxu0 0
    %129 = vmatprep.subr.bf16.mxu0 0
    %130 = vmatpush1.bf16.msra.mxu0 0
    %131 = vmatprep.subr.bf16.mxu0 0
    %132 = vmatpush1.bf16.msra.mxu0 0
    %133 = vmatprep.subr.bf16.mxu0 0
    %134 = vmatpush1.bf16.msra.mxu0 0
    %135 = vmatprep.subr.bf16.mxu0 0
    %136 = vmatpush1.bf16.msra.mxu0 0
    %137 = vmatprep.mubr.bf16.mxu0 0
    %138 = vmatmul.mubr.bf16.gmra.mrb[0].mxu0 %v99
    %v139 = vpop.f32.mrb[0].mxu0
    %v140 = vadd.f32 0.0, %v139
    %v141 = vpop.f32.mrb[0].mxu0
    %v142 = vpop.f32.mrb[0].mxu0
    %v143 = vpop.f32.mrb[0].mxu0
    %144 = vdwg.mxu0
    %v146 = vsel %vm71, %v61, 0
    %v149 = vsel %vm101, %v63, 0
    %151 = vmatprep.subr.bf16.mxu0 0
    %152 = vmatpush1.bf16.msra.mxu0 %v149
    %153 = vmatprep.subr.bf16.mxu0 0
    %154 = vmatpush1.bf16.msra.mxu0 0
    %155 = vmatprep.subr.bf16.mxu0 0
    %156 = vmatpush1.bf16.msra.mxu0 0
    %157 = vmatprep.subr.bf16.mxu0 0
    %158 = vmatpush1.bf16.msra.mxu0 0
    %159 = vmatprep.subr.bf16.mxu0 0
    %160 = vmatpush1.bf16.msra.mxu0 0
    %161 = vmatprep.subr.bf16.mxu0 0
    %162 = vmatpush1.bf16.msra.mxu0 0
    %163 = vmatprep.subr.bf16.mxu0 0
    %164 = vmatpush1.bf16.msra.mxu0 0
    %165 = vmatprep.subr.bf16.mxu0 0
    %166 = vmatpush1.bf16.msra.mxu0 0
    %167 = vmatprep.subr.bf16.mxu0 0
    %168 = vmatpush1.bf16.msra.mxu0 0
    %169 = vmatprep.subr.bf16.mxu0 0
    %170 = vmatpush1.bf16.msra.mxu0 0
    %171 = vmatprep.subr.bf16.mxu0 0
    %172 = vmatpush1.bf16.msra.mxu0 0
    %173 = vmatprep.subr.bf16.mxu0 0
    %174 = vmatpush1.bf16.msra.mxu0 0
    %175 = vmatprep.subr.bf16.mxu0 0
    %176 = vmatpush1.bf16.msra.mxu0 0
    %177 = vmatprep.subr.bf16.mxu0 0
    %178 = vmatpush1.bf16.msra.mxu0 0
    %179 = vmatprep.subr.bf16.mxu0 0
    %180 = vmatpush1.bf16.msra.mxu0 0
    %181 = vmatprep.subr.bf16.mxu0 0
    %182 = vmatpush1.bf16.msra.mxu0 0
    %183 = vmatprep.mubr.bf16.mxu0 0
    %184 = vmatmul.mubr.bf16.gmra.mrb[0].mxu0 %v146
    %v185 = vpop.f32.mrb[0].mxu0
    %v186 = vadd.f32 0.0, %v185
    %v187 = vpop.f32.mrb[0].mxu0
    %v188 = vpop.f32.mrb[0].mxu0
    %v189 = vpop.f32.mrb[0].mxu0
    %190 = vdwg.mxu0
    %v191 = vmul.f32 %v140, %v94
    %v192 = vmul.f32 %v186, %v97
    %v193 = vpack.c.bf16 %v191, %v191
    %v194 = vpack.c.bf16 %v192, %v192
    %v197 = vunpack.c.l.b16 %v193
    %v198 = vunpack.c.l.b16 %v194
    %v199 = vpack.c.b16 %v198, %v197
    %v204 = vunpack.c.l.b16 %v64
    %v205 = vunpack.c.l.b16 %v65
    %v206 = vunpack.c.l.b16 %v66
    %v207 = vunpack.c.l.b16 %v67
    %v208 = vpack.c.b16 %v205, %v204
    %v209 = vpack.c.b16 %v207, %v206
    %vm212 = vcmask 261120
    %v214 = vsel %vm212, %v199, 0
    %216 = vmatprep.subr.bf16.mxu0 0
    %217 = vmatpush1.bf16.msra.mxu0 %v208
    %218 = vmatprep.subr.bf16.mxu0 0
    %219 = vmatpush1.bf16.msra.mxu0 %v209
    %220 = vmatprep.subr.bf16.mxu0 0
    %221 = vmatpush1.bf16.msra.mxu0 0
    %222 = vmatprep.subr.bf16.mxu0 0
    %223 = vmatpush1.bf16.msra.mxu0 0
    %224 = vmatprep.subr.bf16.mxu0 0
    %225 = vmatpush1.bf16.msra.mxu0 0
    %226 = vmatprep.subr.bf16.mxu0 0
    %227 = vmatpush1.bf16.msra.mxu0 0
    %228 = vmatprep.subr.bf16.mxu0 0
    %229 = vmatpush1.bf16.msra.mxu0 0
    %230 = vmatprep.subr.bf16.mxu0 0
    %231 = vmatpush1.bf16.msra.mxu0 0
    %232 = vmatprep.subr.bf16.mxu0 0
    %233 = vmatpush1.bf16.msra.mxu0 0
    %234 = vmatprep.subr.bf16.mxu0 0
    %235 = vmatpush1.bf16.msra.mxu0 0
    %236 = vmatprep.subr.bf16.mxu0 0
    %237 = vmatpush1.bf16.msra.mxu0 0
    %238 = vmatprep.subr.bf16.mxu0 0
    %239 = vmatpush1.bf16.msra.mxu0 0
    %240 = vmatprep.subr.bf16.mxu0 0
    %241 = vmatpush1.bf16.msra.mxu0 0
    %242 = vmatprep.subr.bf16.mxu0 0
    %243 = vmatpush1.bf16.msra.mxu0 0
    %244 = vmatprep.subr.bf16.mxu0 0
    %245 = vmatpush1.bf16.msra.mxu0 0
    %246 = vmatprep.subr.bf16.mxu0 0
    %247 = vmatpush1.bf16.msra.mxu0 0
    %248 = vmatprep.mubr.bf16.mxu0 0
    %249 = vmatmul.mubr.bf16.gmra.mrb[0].mxu0 %v214
    %v250 = vpop.f32.mrb[0].mxu0
    %v251 = vadd.f32 0.0, %v250
    %v252 = vpop.f32.mrb[0].mxu0
    %v253 = vpop.f32.mrb[0].mxu0
    %v254 = vadd.f32 0.0, %v253
    %v255 = vpop.f32.mrb[0].mxu0
    %256 = vdwg.mxu0
    %v258 = vlaneseq
    %v259 = vshrl.u32 %v258, 7
    %v260 = vsub.s32 0, %v259
    %v261 = vrot.slane %v68, %v260
    %v263 = vadd.f32 %v251, %v261
    %v264 = vadd.f32 %v254, %v261
    %v265 = vmax.f32 %v263, 0.0
    %v266 = vmax.f32 %v264, 0.0
    %267 = vst [vmem:[#allocation8] sm:$0xff] %v265
    %268 = vst [vmem:[#allocation8 + $0x8] sm:$0xff] %v266
    // Predicated region
    $region30: #{tpu_custom_call.1} parent=1 // pred_check
      _
    $region31: #{tpu_custom_call.1} parent=1 // pred_check_branch
      %270 = sbr.rel (0) target = $region33
    $region32: #{tpu_custom_call.1} parent=1 // pred_region
      %s272 = ssub.s32 256, 256
      %273 = vsyncadd [#allocation4], %s272
      %s274 = sshll.u32 [#allocation8], 4
      %s275 = int_to_ptr.vmem [resolvable:$true] %s274
      %280 = dma.vmem_to_hbm [thread:$0]  %s275, 256, %s4, [#allocation4], 128, 128, 8
    $region33: #{tpu_custom_call.1} parent=1 // pred_fallthru
      _
    // Predicated region
    $region34: #{tpu_custom_call.1} parent=1 // pred_check
      _
    $region35: #{tpu_custom_call.1} parent=1 // pred_check_branch
      %282 = sbr.rel (0) target = $region37
    $region36: #{tpu_custom_call.1} parent=1 // pred_region
      %283 = dma.done [#allocation4], 256
    $region37: #{tpu_custom_call.1} parent=1 // pred_fallthru
      _
    %284 = vsyncpa [#allocation3], 1
    %285 = vsyncpa [#allocation6], 1
    %286 = vsyncpa [#allocation4], 1

</llo_original>
